<compile_context>
chip_gen: v7x
topology: tpu7x:2x2x1
jax: 0.10.0
libtpu: 0.0.40
codegen_flags: <defaults>
</compile_context>

<pallas_src>
import jax
import jax.numpy as jnp
from jax.experimental import pallas as pl
from jax.experimental.pallas import tpu as pltpu


_TARGET_BLOCK_BYTES = 6 * 1024 * 1024    # per-block VMEM footprint target
_MIN_PARALLEL_BYTES = 4 * 1024 * 1024    # force >= 2 grid steps above this size
_LANE_CANDIDATES = (8192, 4096, 2048, 1024, 512, 256, 128)


def _copy_kernel(x_ref, o_ref):
    # Identity: move the tile through VMEM unchanged.
    o_ref[...] = x_ref[...]


def _round_down(v, m):
    return (v // m) * m


def _round_up(v, m):
    return -(-v // m) * m


def pallas_identity(x):
    """emptyModule.forward: returns a tensor equal to x (single tiled Pallas copy)."""
    n = int(x.size)
    if n == 0:
        return x

    orig_shape = x.shape
    dtype = x.dtype
    itemsize = int(dtype.itemsize)
    sublane = max(8, 32 // itemsize)          # packed sublane multiple: 8 / 16 / 32

    # ---- choose a 2-D view (all reshapes here are free bitcasts) ------------
    lane = next((c for c in _LANE_CANDIDATES if n % c == 0), None)
    if lane is not None:
        x2 = x.reshape(n // lane, lane)                 # lane-dense fast path
    elif x.ndim >= 2 and orig_shape[-1] * itemsize <= _TARGET_BLOCK_BYTES:
        x2 = x.reshape(-1, orig_shape[-1])              # keep original trailing dim
    else:
        x2 = x.reshape(1, n)                            # column-tiled fallback

    rows, cols = x2.shape
    total_bytes = n * itemsize
    row_bytes = cols * itemsize

    # ---- block sizing: by bytes, dtype-aware sublane alignment --------------
    if row_bytes <= _TARGET_BLOCK_BYTES:
        tc = cols                                       # full extent (always legal)
        tm = max(sublane, _round_down(_TARGET_BLOCK_BYTES // row_bytes, sublane))
        if tm >= rows:
            if total_bytes > _MIN_PARALLEL_BYTES and rows > sublane:
                # Keep >= 2 row blocks so v7x's two TensorCores share the copy.
                half = (rows + 1) // 2
                tm = min(tm, max(sublane, _round_up(half, sublane)))
            else:
                tm = rows                               # single full-extent block
    else:
        # Pathological unaligned huge-row fallback: tile along the lane axis.
        tm = rows                                       # == 1
        tc = max(128, _round_down(_TARGET_BLOCK_BYTES // itemsize, 128))

    grid = (pl.cdiv(rows, tm), pl.cdiv(cols, tc))       # partial boundary blocks OK

    out2 = pl.pallas_call(
        _copy_kernel,
        out_shape=jax.ShapeDtypeStruct((rows, cols), dtype),
        grid=grid,
        in_specs=[pl.BlockSpec((tm, tc), lambda i, j: (i, j))],
        out_specs=pl.BlockSpec((tm, tc), lambda i, j: (i, j)),
        compiler_params=pltpu.CompilerParams(
            dimension_semantics=("parallel", "parallel"),
            vmem_limit_bytes=32 * 1024 * 1024,
        ),
        cost_estimate=pl.CostEstimate(
            flops=0, transcendentals=0, bytes_accessed=2 * total_bytes),
    )(x2)

    return out2.reshape(orig_shape)                     # free bitcast back


if __name__ == "__main__":
    fwd = jax.jit(pallas_identity)

    # Small deterministic example input: batch=2, channels=4, spatial=16x16.
    key = jax.random.PRNGKey(0)
    x = jax.random.normal(key, (2, 4, 16, 16), dtype=jnp.float32)
    out = jax.block_until_ready(fwd(x))
    assert out.shape == x.shape and out.dtype == x.dtype
    assert bool(jnp.all(out == x))            # exact identity (pure data movement)
    assert bool(jnp.all(jnp.isfinite(out)))

    # Non-128-aligned shape: exercises the masked partial-block path (no pads).
    xb = jax.random.normal(jax.random.PRNGKey(1), (3, 7, 19), dtype=jnp.float32)
    outb = jax.block_until_ready(fwd(xb))
    assert outb.shape == xb.shape and bool(jnp.all(outb == xb))

    # bf16 input: exercises the 16-row packed-sublane tile alignment.
    xc = jax.random.normal(jax.random.PRNGKey(2), (2, 8, 32, 32)).astype(jnp.bfloat16)
    outc = jax.block_until_ready(fwd(xc))
    assert outc.shape == xc.shape and outc.dtype == xc.dtype
    assert bool(jnp.all(outc == xc))

    print("KERNEL_OK")
</pallas_src>

<mosaic_0001>
module attributes {stable_mosaic.version = 11 : i64} {
  func.func @_copy_kernel(%arg0: i32, %arg1: i32, %arg2: memref<1x2048xf32, #tpu.memory_space<vmem>>, %arg3: memref<1x2048xf32, #tpu.memory_space<vmem>>) attributes {dimension_semantics = [#tpu.dimension_semantics<parallel>, #tpu.dimension_semantics<parallel>], iteration_bounds = array<i64: 1, 1>, scalar_prefetch = 0 : i64, scratch_operands = 0 : i64, tpu.core_type = #tpu.core_type<tc>, window_params = [{transform_indices = @transform_0, window_bounds = array<i64: 1, 2048>}, {transform_indices = @transform_1, window_bounds = array<i64: 1, 2048>}]} {
    %c0 = arith.constant 0 : index
    %c0_0 = arith.constant 0 : index
    %0 = vector.load %arg2[%c0, %c0_0] : memref<1x2048xf32, #tpu.memory_space<vmem>>, vector<1x2048xf32>
    %c0_1 = arith.constant 0 : index
    %c0_2 = arith.constant 0 : index
    %1 = vector.load %arg3[%c0_1, %c0_2] : memref<1x2048xf32, #tpu.memory_space<vmem>>, vector<1x2048xf32>
    tpu.vector_store %arg3[%c0_1, %c0_2], %0 {strides = array<i32>} : memref<1x2048xf32, #tpu.memory_space<vmem>>, vector<1x2048xf32>,
    return
  }
  func.func @transform_0(%arg0: i32, %arg1: i32) -> (i32, i32) {
    %c0_i32 = arith.constant 0 : i32
    return %arg0, %arg1 : i32, i32
  }
  func.func @transform_1(%arg0: i32, %arg1: i32) -> (i32, i32) {
    %c0_i32 = arith.constant 0 : i32
    return %arg0, %arg1 : i32, i32
  }
}

</mosaic_0001>

<llo_original>
// kernel: pallas_identity.1
$region0: #{pallas_identity.1}
  #allocation0 [shape = 'u32[]', space=smem, size = 0x4, offset = 0x4, fixed_abs, tag = 'smem constant byte address 0x4 - core index']
  #allocation1 [shape = 'u32[144,128]{1,0:T(1,128)}', space=vmem, size = 0x12000, scoped, tag = 'internal scratch']
  %s0 = inlined_call_operand.vmem [shape: f32[1,2048], index: 0, kind: input, shape index: {}]
  %s1 = inlined_call_operand.vmem [shape: f32[1,2048], index: 1, kind: output, shape index: {}]
  %s2 = sld [smem:[#allocation0]]
  $region14: #{pallas_identity.1} parent=0
    _
  %s4 = ssub.s32 1, %s2
  %s5 = scalar_select 0, %s4, %s2
  // Predicated region
  $region2: #{pallas_identity.1} parent=0 // pred_check
    _
  $region3: #{pallas_identity.1} parent=0 // pred_check_branch
    %7 = sbr.rel (0) target = $region5
  $region4: #{pallas_identity.1} parent=0 // pred_region
    _
  $region5: #{pallas_identity.1} parent=0 // pred_fallthru
    _
  %v8 = vld [vmem:[%s0] sm:$0xff]
  %v9 = vld [vmem:[%s0 + $0x8] sm:$0xff]
  %10 = vst [vmem:[%s1] sm:$0xff] %v8
  %11 = vst [vmem:[%s1 + $0x8] sm:$0xff] %v9
  // Predicated region
  $region6: #{pallas_identity.1} parent=0 // pred_check
    _
  $region7: #{pallas_identity.1} parent=0 // pred_check_branch
    %13 = sbr.rel (0) target = $region9
  $region8: #{pallas_identity.1} parent=0 // pred_region
    _
  $region9: #{pallas_identity.1} parent=0 // pred_fallthru
    _
  // Predicated region
  $region10: #{pallas_identity.1} parent=0 // pred_check
    _
  $region11: #{pallas_identity.1} parent=0 // pred_check_branch
    %15 = sbr.rel (0) target = $region13
  $region12: #{pallas_identity.1} parent=0 // pred_region
    _
  $region13: #{pallas_identity.1} parent=0 // pred_fallthru
    _

</llo_original>
